<compile_context>
chip_gen: v5e
topology: v5e:2x2
jax: 0.10.0
libtpu: 0.0.40
codegen_flags: <defaults>
</compile_context>

<pallas_src>
import functools

import jax
import jax.numpy as jnp
from jax.experimental import pallas as pl
from jax.experimental.pallas import tpu as pltpu


def _disc_kernel(x_ref, w1t_ref, b1_ref, w2_ref, b2_ref, w3_ref, b3_ref, o_ref):
    # x_ref: (TB, IN) f32 — natural layout straight from HBM (no wrapper-side
    # pad/transpose/cast pass over the whole batch anymore).
    xb = x_ref[...].astype(jnp.bfloat16)

    # Layer 1 (natural orientation): (TB, IN) @ (IN, 256) -> (TB, 256)
    h1 = jnp.dot(xb, w1t_ref[...], preferred_element_type=jnp.float32)
    h1 = h1 + b1_ref[...]                       # bias row (1, 256), f32
    h1 = jnp.maximum(h1, 0.2 * h1)              # LeakyReLU(0.2), max-form

    # Switch to batch-on-lanes for the rest of the net: native-shaped
    # (TB,256) -> (256,TB) f32 transpose on the XLU (slack while the MXU does
    # layer 2), then cast the matmul operand to bf16.
    # TODO(synk): do this transpose directly in bf16 (halves XLU/cast work)
    # once packed 16-bit transposes are verified on the target toolchain.
    h1t = h1.T.astype(jnp.bfloat16)             # (256, TB)

    # Layer 2 (transposed): (256, 256) @ (256, TB) -> (256, TB)
    h2 = jnp.dot(w2_ref[...], h1t, preferred_element_type=jnp.float32)
    h2 = h2.astype(jnp.bfloat16) + b2_ref[...]  # bf16 bias add (256, 1)
    h2 = jnp.maximum(h2, 0.2 * h2)              # LeakyReLU(0.2) in bf16

    # Layer 3: (1, 256) @ (256, TB) -> (1, TB), + bias, Sigmoid.
    h3 = jnp.dot(w3_ref[...], h2, preferred_element_type=jnp.float32)
    h3 = h3 + b3_ref[0]                         # scalar bias from SMEM
    # exp -> EUP, approx reciprocal -> EUP: both off the VALU critical slot.
    o_ref[...] = pl.reciprocal(1.0 + jnp.exp(-h3), approx=True)   # (1, TB) lane-dense


def _round_up(n, m):
    return (n + m - 1) // m * m


def prepare_params(params):
    """One-time conversion of PyTorch-layout f32 params to kernel layout.

    Weights are stored in bf16 (native MXU dtype; halves persistent footprint
    and per-call DMA bytes).  Done once here instead of inside every jitted
    forward call.
    """
    w1, b1 = params["w1"], params["b1"]
    w2, b2 = params["w2"], params["b2"]
    w3, b3 = params["w3"], params["b3"]
    return {
        "w1t": jnp.asarray(w1.T, jnp.bfloat16),                 # (IN, 256)
        "b1": jnp.asarray(b1.reshape(1, -1), jnp.float32),      # (1, 256)
        "w2": jnp.asarray(w2, jnp.bfloat16),                    # (256, 256)
        "b2": jnp.asarray(b2.reshape(-1, 1), jnp.bfloat16),     # (256, 1)
        "w3": jnp.asarray(w3, jnp.bfloat16),                    # (1, 256)
        "b3": jnp.asarray(b3.reshape(-1), jnp.float32),         # (1,) -> SMEM scalar
    }


@functools.partial(jax.jit, static_argnames=("tb",))
def discriminator_forward(x, kparams, *, tb=2048):
    """x: [B, INUNITS] float32; kparams from prepare_params(). Returns [B, 1] f32."""
    B, inunits = x.shape
    hid = kparams["w2"].shape[0]                # 256

    # Batch tile: lane-aligned (multiple of 128).  Default 2048 (sweep 2048-4096).
    tb_eff = min(tb, _round_up(B, 128))
    # v7x megacore: if everything would fit in one grid step, halve the tile so
    # there are >=2 steps and both TensorCores get work (keep it 128-aligned).
    if tb_eff >= 256 and tb_eff % 256 == 0 and _round_up(B, tb_eff) == tb_eff:
        tb_eff //= 2
    b_pad = _round_up(B, tb_eff)
    num_tiles = b_pad // tb_eff

    # Only pad (cheap, skipped entirely when B is already tile-aligned); the
    # transpose + bf16 cast now happen inside the kernel.
    x_in = x if b_pad == B else jnp.pad(x, ((0, b_pad - B), (0, 0)))

    grid = (num_tiles,)
    in_specs = [
        pl.BlockSpec((tb_eff, inunits), lambda i: (i, 0)),      # x tile (natural layout)
        pl.BlockSpec((inunits, hid), lambda i: (0, 0)),         # W1^T  (bf16)
        pl.BlockSpec((1, hid), lambda i: (0, 0)),               # b1 row (f32)
        pl.BlockSpec((hid, hid), lambda i: (0, 0)),             # W2    (bf16)
        pl.BlockSpec((hid, 1), lambda i: (0, 0)),               # b2 col (bf16)
        pl.BlockSpec((1, hid), lambda i: (0, 0)),               # W3    (bf16)
        pl.BlockSpec(memory_space=pltpu.MemorySpace.SMEM),      # b3 scalar
    ]
    # Lane-dense output: one contiguous (1, tb) row per grid step.
    out_specs = pl.BlockSpec((1, tb_eff), lambda i: (0, i))

    out = pl.pallas_call(
        _disc_kernel,
        out_shape=jax.ShapeDtypeStruct((1, b_pad), jnp.float32),
        grid_spec=pltpu.PrefetchScalarGridSpec(
            num_scalar_prefetch=0,
            grid=grid,
            in_specs=in_specs,
            out_specs=out_specs,
        ),
        compiler_params=pltpu.CompilerParams(
            dimension_semantics=("parallel",)),
    )(x_in, kparams["w1t"], kparams["b1"], kparams["w2"], kparams["b2"],
      kparams["w3"], kparams["b3"])

    return out[0, :B].reshape(B, 1)


def init_params(key, inunits, hidden=256):
    """PyTorch nn.Linear-style init; weights in (out_features, in_features) layout."""
    ks = jax.random.split(key, 6)

    def lin(kw, kb, fan_in, fan_out):
        bound = 1.0 / jnp.sqrt(float(fan_in))
        w = jax.random.uniform(kw, (fan_out, fan_in), jnp.float32, -bound, bound)
        b = jax.random.uniform(kb, (fan_out,), jnp.float32, -bound, bound)
        return w, b

    w1, b1 = lin(ks[0], ks[1], inunits, hidden)
    w2, b2 = lin(ks[2], ks[3], hidden, hidden)
    w3, b3 = lin(ks[4], ks[5], hidden, 1)
    return {"w1": w1, "b1": b1, "w2": w2, "b2": b2, "w3": w3, "b3": b3}


def _reference(x, p):
    """Pure-JAX f32 reference matching the PyTorch module."""
    h1 = x @ p["w1"].T + p["b1"]
    h1 = jnp.where(h1 > 0, h1, 0.2 * h1)
    h2 = h1 @ p["w2"].T + p["b2"]
    h2 = jnp.where(h2 > 0, h2, 0.2 * h2)
    h3 = h2 @ p["w3"].T + p["b3"]
    return jax.nn.sigmoid(h3)


if __name__ == "__main__":
    key = jax.random.PRNGKey(0)
    k_param, k_x = jax.random.split(key)

    INUNITS = 32   # small feature dim consistent with Linear(INUNITS, 256)
    BATCH = 8

    params = init_params(k_param, INUNITS)
    kparams = prepare_params(params)            # one-time bf16 / layout conversion
    x = jax.random.normal(k_x, (BATCH, INUNITS), jnp.float32)

    out = discriminator_forward(x, kparams)
    out = jax.block_until_ready(out)

    ref = _reference(x, params)
    assert out.shape == (BATCH, 1)
    assert bool(jnp.all(jnp.isfinite(out)))
    # bf16 matmul operands / bf16 layer-2 activation with f32 accumulation
    # -> loose tolerance vs the f32 reference.
    assert jnp.allclose(out, ref, atol=2e-2, rtol=0.0), "mismatch vs JAX reference"

    print("KERNEL_OK")
</pallas_src>

<mosaic_0001>
module attributes {stable_mosaic.version = 11 : i64} {
  func.func @_disc_kernel(%arg0: i32, %arg1: memref<128x32xf32, #tpu.memory_space<vmem>>, %arg2: memref<32x256xbf16, #tpu.memory_space<vmem>>, %arg3: memref<1x256xf32, #tpu.memory_space<vmem>>, %arg4: memref<256x256xbf16, #tpu.memory_space<vmem>>, %arg5: memref<256x1xbf16, #tpu.memory_space<vmem>>, %arg6: memref<1x256xbf16, #tpu.memory_space<vmem>>, %arg7: memref<1xf32, #tpu.memory_space<smem>>, %arg8: memref<1x128xf32, #tpu.memory_space<vmem>>) attributes {dimension_semantics = [#tpu.dimension_semantics<parallel>], iteration_bounds = array<i64: 1>, scalar_prefetch = 0 : i64, scratch_operands = 0 : i64, tpu.core_type = #tpu.core_type<tc>, window_params = [{transform_indices = @transform_0, window_bounds = array<i64: 128, 32>}, {pipeline_mode = #tpu.pipeline_mode<synchronous>, transform_indices = @transform_1, window_bounds = array<i64: 32, 256>}, {pipeline_mode = #tpu.pipeline_mode<synchronous>, transform_indices = @transform_2, window_bounds = array<i64: 1, 256>}, {pipeline_mode = #tpu.pipeline_mode<synchronous>, transform_indices = @transform_3, window_bounds = array<i64: 256, 256>}, {pipeline_mode = #tpu.pipeline_mode<synchronous>, transform_indices = @transform_4, window_bounds = array<i64: 256, 1>}, {pipeline_mode = #tpu.pipeline_mode<synchronous>, transform_indices = @transform_5, window_bounds = array<i64: 1, 256>}, {transform_indices = @transform_6, window_bounds = array<i64: 1>}, {transform_indices = @transform_7, window_bounds = array<i64: 1, 128>}]} {
    %c0 = arith.constant 0 : index
    %c0_0 = arith.constant 0 : index
    %0 = vector.load %arg1[%c0, %c0_0] : memref<128x32xf32, #tpu.memory_space<vmem>>, vector<128x32xf32>
    %1 = arith.truncf %0 : vector<128x32xf32> to vector<128x32xbf16>
    %c0_1 = arith.constant 0 : index
    %c0_2 = arith.constant 0 : index
    %2 = vector.load %arg2[%c0_1, %c0_2] : memref<32x256xbf16, #tpu.memory_space<vmem>>, vector<32x256xbf16>
    %cst = arith.constant dense<0.000000e+00> : vector<128x256xf32>
    %3 = tpu.matmul %1, %2, %cst {dimension_numbers = #tpu.dot_dimension_numbers<[1], [0], [0], [1], [0, 0, 1, 1], [], []>} : vector<128x32xbf16>, vector<32x256xbf16>, vector<128x256xf32> -> vector<128x256xf32>
    %c0_3 = arith.constant 0 : index
    %c0_4 = arith.constant 0 : index
    %4 = vector.load %arg3[%c0_3, %c0_4] : memref<1x256xf32, #tpu.memory_space<vmem>>, vector<1x256xf32>
    %5 = vector.broadcast %4 : vector<1x256xf32> to vector<128x256xf32>
    %6 = arith.addf %3, %5 : vector<128x256xf32>
    %cst_5 = arith.constant 2.000000e-01 : f32
    %7 = vector.broadcast %cst_5 : f32 to vector<128x256xf32>
    %8 = arith.mulf %7, %6 : vector<128x256xf32>
    %9 = arith.maximumf %6, %8 : vector<128x256xf32>
    %10 = tpu.transpose %9, [1, 0] : vector<128x256xf32> -> vector<256x128xf32>
    %11 = arith.truncf %10 : vector<256x128xf32> to vector<256x128xbf16>
    %c0_6 = arith.constant 0 : index
    %c0_7 = arith.constant 0 : index
    %12 = vector.load %arg4[%c0_6, %c0_7] : memref<256x256xbf16, #tpu.memory_space<vmem>>, vector<256x256xbf16>
    %cst_8 = arith.constant dense<0.000000e+00> : vector<256x128xf32>
    %13 = tpu.matmul %12, %11, %cst_8 {dimension_numbers = #tpu.dot_dimension_numbers<[1], [0], [0], [1], [0, 0, 1, 1], [], []>} : vector<256x256xbf16>, vector<256x128xbf16>, vector<256x128xf32> -> vector<256x128xf32>
    %14 = arith.truncf %13 : vector<256x128xf32> to vector<256x128xbf16>
    %c0_9 = arith.constant 0 : index
    %c0_10 = arith.constant 0 : index
    %15 = vector.load %arg5[%c0_9, %c0_10] : memref<256x1xbf16, #tpu.memory_space<vmem>>, vector<256x1xbf16>
    %16 = vector.broadcast %15 : vector<256x1xbf16> to vector<256x128xbf16>
    %17 = arith.addf %14, %16 : vector<256x128xbf16>
    %cst_11 = arith.constant 2.001950e-01 : bf16
    %18 = vector.broadcast %cst_11 : bf16 to vector<256x128xbf16>
    %19 = arith.mulf %18, %17 : vector<256x128xbf16>
    %20 = arith.maximumf %17, %19 : vector<256x128xbf16>
    %c0_12 = arith.constant 0 : index
    %c0_13 = arith.constant 0 : index
    %21 = vector.load %arg6[%c0_12, %c0_13] : memref<1x256xbf16, #tpu.memory_space<vmem>>, vector<1x256xbf16>
    %cst_14 = arith.constant dense<0.000000e+00> : vector<1x128xf32>
    %22 = tpu.matmul %21, %20, %cst_14 {dimension_numbers = #tpu.dot_dimension_numbers<[1], [0], [0], [1], [0, 0, 1, 1], [], []>} : vector<1x256xbf16>, vector<256x128xbf16>, vector<1x128xf32> -> vector<1x128xf32>
    %c0_15 = arith.constant 0 : index
    %23 = memref.load %arg7[%c0_15] : memref<1xf32, #tpu.memory_space<smem>>
    %24 = vector.broadcast %23 : f32 to vector<1x128xf32>
    %25 = arith.addf %22, %24 : vector<1x128xf32>
    %cst_16 = arith.constant 0.000000e+00 : f32
    %26 = vector.broadcast %cst_16 : f32 to vector<1x128xf32>
    %27 = arith.subf %26, %25 : vector<1x128xf32>
    %28 = math.exp %27 : vector<1x128xf32>
    %cst_17 = arith.constant 1.000000e+00 : f32
    %29 = vector.broadcast %cst_17 : f32 to vector<1x128xf32>
    %30 = arith.addf %29, %28 : vector<1x128xf32>
    %31 = tpu.reciprocal %30 {approx = true} : vector<1x128xf32> -> vector<1x128xf32>
    %c0_18 = arith.constant 0 : index
    %c0_19 = arith.constant 0 : index
    %32 = vector.load %arg8[%c0_18, %c0_19] : memref<1x128xf32, #tpu.memory_space<vmem>>, vector<1x128xf32>
    tpu.vector_store %arg8[%c0_18, %c0_19], %31 {strides = array<i32>} : memref<1x128xf32, #tpu.memory_space<vmem>>, vector<1x128xf32>,
    return
  }
  func.func @transform_0(%arg0: i32) -> (i32, i32) {
    %c0_i32 = arith.constant 0 : i32
    %c0_i32_0 = arith.constant 0 : i32
    return %arg0, %c0_i32 : i32, i32
  }
  func.func @transform_1(%arg0: i32) -> (i32, i32) {
    %c0_i32 = arith.constant 0 : i32
    %c0_i32_0 = arith.constant 0 : i32
    %c0_i32_1 = arith.constant 0 : i32
    return %c0_i32, %c0_i32_0 : i32, i32
  }
  func.func @transform_2(%arg0: i32) -> (i32, i32) {
    %c0_i32 = arith.constant 0 : i32
    %c0_i32_0 = arith.constant 0 : i32
    %c0_i32_1 = arith.constant 0 : i32
    return %c0_i32, %c0_i32_0 : i32, i32
  }
  func.func @transform_3(%arg0: i32) -> (i32, i32) {
    %c0_i32 = arith.constant 0 : i32
    %c0_i32_0 = arith.constant 0 : i32
    %c0_i32_1 = arith.constant 0 : i32
    return %c0_i32, %c0_i32_0 : i32, i32
  }
  func.func @transform_4(%arg0: i32) -> (i32, i32) {
    %c0_i32 = arith.constant 0 : i32
    %c0_i32_0 = arith.constant 0 : i32
    %c0_i32_1 = arith.constant 0 : i32
    return %c0_i32, %c0_i32_0 : i32, i32
  }
  func.func @transform_5(%arg0: i32) -> (i32, i32) {
    %c0_i32 = arith.constant 0 : i32
    %c0_i32_0 = arith.constant 0 : i32
    %c0_i32_1 = arith.constant 0 : i32
    return %c0_i32, %c0_i32_0 : i32, i32
  }
  func.func @transform_6(%arg0: i32) -> i32 {
    %c0_i32 = arith.constant 0 : i32
    %c0_i32_0 = arith.constant 0 : i32
    return %c0_i32 : i32
  }
  func.func @transform_7(%arg0: i32) -> (i32, i32) {
    %c0_i32 = arith.constant 0 : i32
    %c0_i32_0 = arith.constant 0 : i32
    return %c0_i32, %arg0 : i32, i32
  }
}

</mosaic_0001>

<llo_original>
// kernel: discriminator_forward.1
$region0: #{discriminator_forward.1}
  #allocation0 [shape = 'u32[]', space=smem, size = 0x4, offset = 0x4, fixed_abs, tag = 'smem constant byte address 0x4 - core index']
  #allocation1 [shape = 'u32[72,128]{1,0:T(1,128)}', space=vmem, size = 0x9000, scoped, tag = 'internal scratch']
  #allocation2 [shape = 'f32[1]{0:T(128)S(6)}', space=smem, size = 0x200, scoped, tag = 'scoped memory for discriminator_forward.1']
  %s0 = inlined_call_operand.vmem [shape: f32[128,32], index: 0, kind: input, shape index: {}]
  %s1 = inlined_call_operand.hbm [shape: bf16[32,256], index: 1, kind: input, shape index: {}]
  %s2 = inlined_call_operand.vmem [shape: f32[1,256], index: 2, kind: input, shape index: {}]
  %s3 = inlined_call_operand.vmem [shape: bf16[256,256], index: 3, kind: input, shape index: {}]
  %s4 = inlined_call_operand.vmem [shape: bf16[256,1], index: 4, kind: input, shape index: {}]
  %s5 = inlined_call_operand.vmem [shape: bf16[1,256], index: 5, kind: input, shape index: {}]
  %s6 = inlined_call_operand.<no memory space> [shape: f32[1], index: 6, kind: input, shape index: {}]
  %s7 = inlined_call_operand.vmem [shape: f32[1,128], index: 7, kind: output, shape index: {}]
  %s8 = sld [smem:[#allocation0]]
  $region42: #{discriminator_forward.1} parent=0
    _
  %s10 = ssub.s32 1, %s8
  %s11 = scalar_select 0, %s10, %s8
  %12 = sst [smem:[#allocation2]] %s6
  $region1: #{discriminator_forward.1} parent=0
    #allocation3 [shape = 'u8[16384]{0}', space=vmem, size = 0x4000, scoped, tag = 'input window, operand 1, single buffered']
    #allocation4 [shape = 's32[1]{0}', space=sflag, size = 0x4, scoped, tag = 'scoped memory for discriminator_forward.1']
    %13 = vsyncpa [#allocation4], 0
    // Predicated region
    $region2: #{discriminator_forward.1} parent=1 // pred_check
      _
    $region3: #{discriminator_forward.1} parent=1 // pred_check_branch
      %15 = sbr.rel (0) target = $region5
    $region4: #{discriminator_forward.1} parent=1 // pred_region
      _
    $region5: #{discriminator_forward.1} parent=1 // pred_fallthru
      _
    // Predicated region
    $region6: #{discriminator_forward.1} parent=1 // pred_check
      _
    $region7: #{discriminator_forward.1} parent=1 // pred_check_branch
      %17 = sbr.rel (0) target = $region9
    $region8: #{discriminator_forward.1} parent=1 // pred_region
      %19 = vsyncadd [#allocation4], 0
      %s20 = sshll.u32 %s1, 4
      %s21 = int_to_ptr.hbm [resolvable:$true] %s20
      %s22 = sshll.u32 [#allocation3], 4
      %s23 = int_to_ptr.vmem [resolvable:$true] %s22
      %28 = dma.hbm_to_vmem [thread:$0]  %s21, 512, %s23, [#allocation4], 128, 128, 8
    $region9: #{discriminator_forward.1} parent=1 // pred_fallthru
      _
    // Predicated region
    $region10: #{discriminator_forward.1} parent=1 // pred_check
      _
    $region11: #{discriminator_forward.1} parent=1 // pred_check_branch
      %30 = sbr.rel (0) target = $region13
    $region12: #{discriminator_forward.1} parent=1 // pred_region
      _
    $region13: #{discriminator_forward.1} parent=1 // pred_fallthru
      _
    // Predicated region
    $region14: #{discriminator_forward.1} parent=1 // pred_check
      _
    $region15: #{discriminator_forward.1} parent=1 // pred_check_branch
      %32 = sbr.rel (0) target = $region17
    $region16: #{discriminator_forward.1} parent=1 // pred_region
      _
    $region17: #{discriminator_forward.1} parent=1 // pred_fallthru
      _
    // Predicated region
    $region18: #{discriminator_forward.1} parent=1 // pred_check
      _
    $region19: #{discriminator_forward.1} parent=1 // pred_check_branch
      %34 = sbr.rel (0) target = $region21
    $region20: #{discriminator_forward.1} parent=1 // pred_region
      _
    $region21: #{discriminator_forward.1} parent=1 // pred_fallthru
      _
    // Predicated region
    $region22: #{discriminator_forward.1} parent=1 // pred_check
      _
    $region23: #{discriminator_forward.1} parent=1 // pred_check_branch
      %36 = sbr.rel (0) target = $region25
    $region24: #{discriminator_forward.1} parent=1 // pred_region
      _
    $region25: #{discriminator_forward.1} parent=1 // pred_fallthru
      _
    // Predicated region
    $region26: #{discriminator_forward.1} parent=1 // pred_check
      _
    $region27: #{discriminator_forward.1} parent=1 // pred_check_branch
      %38 = sbr.rel (0) target = $region29
    $region28: #{discriminator_forward.1} parent=1 // pred_region
      _
    $region29: #{discriminator_forward.1} parent=1 // pred_fallthru
      _
    // Predicated region
    $region30: #{discriminator_forward.1} parent=1 // pred_check
      _
    $region31: #{discriminator_forward.1} parent=1 // pred_check_branch
      %40 = sbr.rel (0) target = $region33
    $region32: #{discriminator_forward.1} parent=1 // pred_region
      %42 = dma.done [#allocation4], 512
    $region33: #{discriminator_forward.1} parent=1 // pred_fallthru
      _
    %v44 = vld [vmem:[%s0] sm:$0xff]
    %v45 = vld [vmem:[%s0 + $0x8] sm:$0xff]
    %v46 = vld [vmem:[%s0 + $0x10] sm:$0xff]
    %v47 = vld [vmem:[%s0 + $0x18] sm:$0xff]
    %v48 = vld [vmem:[%s0 + $0x20] sm:$0xff]
    %v49 = vld [vmem:[%s0 + $0x28] sm:$0xff]
    %v50 = vld [vmem:[%s0 + $0x30] sm:$0xff]
    %v51 = vld [vmem:[%s0 + $0x38] sm:$0xff]
    %v52 = vld [vmem:[%s0 + $0x40] sm:$0xff]
    %v53 = vld [vmem:[%s0 + $0x48] sm:$0xff]
    %v54 = vld [vmem:[%s0 + $0x50] sm:$0xff]
    %v55 = vld [vmem:[%s0 + $0x58] sm:$0xff]
    %v56 = vld [vmem:[%s0 + $0x60] sm:$0xff]
    %v57 = vld [vmem:[%s0 + $0x68] sm:$0xff]
    %v58 = vld [vmem:[%s0 + $0x70] sm:$0xff]
    %v59 = vld [vmem:[%s0 + $0x78] sm:$0xff]
    %v60 = vpack.c.bf16 %v45, %v44
    %v61 = vpack.c.bf16 %v47, %v46
    %v62 = vpack.c.bf16 %v49, %v48
    %v63 = vpack.c.bf16 %v51, %v50
    %v64 = vpack.c.bf16 %v53, %v52
    %v65 = vpack.c.bf16 %v55, %v54
    %v66 = vpack.c.bf16 %v57, %v56
    %v67 = vpack.c.bf16 %v59, %v58
    %v68 = vld [vmem:[#allocation3] sm:$0xff]
    %v69 = vld [vmem:[#allocation3 + $0x8] sm:$0xff]
    %v70 = vld [vmem:[#allocation3 + $0x10] sm:$0xff]
    %v71 = vld [vmem:[#allocation3 + $0x18] sm:$0xff]
    %v72 = vld [vmem:[%s2] sm:$0x3]
    %v74 = vperm.slane %v72, 0
    %v75 = vperm.slane %v72, 1
    %v82 = vunpack.c.l.b16 %v68
    %v83 = vunpack.c.h.b16 %v68
    %v84 = vunpack.c.l.b16 %v69
    %v85 = vunpack.c.h.b16 %v69
    %v86 = vunpack.c.l.b16 %v70
    %v87 = vunpack.c.h.b16 %v70
    %v88 = vunpack.c.l.b16 %v71
    %v89 = vunpack.c.h.b16 %v71
    %v90 = vpack.c.b16 %v84, %v82
    %v91 = vpack.c.b16 %v85, %v83
    %v92 = vpack.c.b16 %v88, %v86
    %v93 = vpack.c.b16 %v89, %v87
    %vm98 = vcmask 261120
    %v100 = vsel %vm98, %v60, 0
    %v103 = vsel %vm98, %v61, 0
    %v106 = vsel %vm98, %v62, 0
    %v109 = vsel %vm98, %v63, 0
    %v112 = vsel %vm98, %v64, 0
    %v115 = vsel %vm98, %v65, 0
    %v118 = vsel %vm98, %v66, 0
    %v121 = vsel %vm98, %v67, 0
    %123 = vmatpush.bf16.msra.mxu0 0
    %124 = vmatpush.bf16.msra.mxu0 0
    %125 = vmatpush.bf16.msra.mxu0 0
    %126 = vmatpush.bf16.msra.mxu0 0
    %127 = vmatpush.bf16.msra.mxu0 0
    %128 = vmatpush.bf16.msra.mxu0 0
    %129 = vmatpush.bf16.msra.mxu0 %v92
    %130 = vmatpush.bf16.msra.mxu0 %v90
    %131 = vmatmul.bf16.gmra.mxu0 %v100
    %v132 = vpop.f32.mrf.mxu0
    %v133 = vadd.f32 %v74, %v132
    %v134 = vpop.f32.mrf.mxu0
    %v135 = vadd.f32 %v74, %v134
    %136 = vmatmul.bf16.gmra.mxu0 %v103
    %v137 = vpop.f32.mrf.mxu0
    %v138 = vadd.f32 %v74, %v137
    %v139 = vpop.f32.mrf.mxu0
    %v140 = vadd.f32 %v74, %v139
    %141 = vmatmul.bf16.gmra.mxu0 %v106
    %v142 = vpop.f32.mrf.mxu0
    %v143 = vadd.f32 %v74, %v142
    %v144 = vpop.f32.mrf.mxu0
    %v145 = vadd.f32 %v74, %v144
    %146 = vmatmul.bf16.gmra.mxu0 %v109
    %v147 = vpop.f32.mrf.mxu0
    %v148 = vadd.f32 %v74, %v147
    %v149 = vpop.f32.mrf.mxu0
    %v150 = vadd.f32 %v74, %v149
    %151 = vmatmul.bf16.gmra.mxu0 %v112
    %v152 = vpop.f32.mrf.mxu0
    %v153 = vadd.f32 %v74, %v152
    %v154 = vpop.f32.mrf.mxu0
    %v155 = vadd.f32 %v74, %v154
    %156 = vmatmul.bf16.gmra.mxu0 %v115
    %v157 = vpop.f32.mrf.mxu0
    %v158 = vadd.f32 %v74, %v157
    %v159 = vpop.f32.mrf.mxu0
    %v160 = vadd.f32 %v74, %v159
    %161 = vmatmul.bf16.gmra.mxu0 %v118
    %v162 = vpop.f32.mrf.mxu0
    %v163 = vadd.f32 %v74, %v162
    %v164 = vpop.f32.mrf.mxu0
    %v165 = vadd.f32 %v74, %v164
    %166 = vmatmul.bf16.gmra.mxu0 %v121
    %v167 = vpop.f32.mrf.mxu0
    %v168 = vadd.f32 %v74, %v167
    %v169 = vpop.f32.mrf.mxu0
    %v170 = vadd.f32 %v74, %v169
    %171 = vdwg.mxu0
    %172 = vmatpush.bf16.msra.mxu0 0
    %173 = vmatpush.bf16.msra.mxu0 0
    %174 = vmatpush.bf16.msra.mxu0 0
    %175 = vmatpush.bf16.msra.mxu0 0
    %176 = vmatpush.bf16.msra.mxu0 0
    %177 = vmatpush.bf16.msra.mxu0 0
    %178 = vmatpush.bf16.msra.mxu0 %v93
    %179 = vmatpush.bf16.msra.mxu0 %v91
    %180 = vmatmul.bf16.gmra.mxu0 %v100
    %v181 = vpop.f32.mrf.mxu0
    %v182 = vadd.f32 %v75, %v181
    %v183 = vpop.f32.mrf.mxu0
    %v184 = vadd.f32 %v75, %v183
    %185 = vmatmul.bf16.gmra.mxu0 %v103
    %v186 = vpop.f32.mrf.mxu0
    %v187 = vadd.f32 %v75, %v186
    %v188 = vpop.f32.mrf.mxu0
    %v189 = vadd.f32 %v75, %v188
    %190 = vmatmul.bf16.gmra.mxu0 %v106
    %v191 = vpop.f32.mrf.mxu0
    %v192 = vadd.f32 %v75, %v191
    %v193 = vpop.f32.mrf.mxu0
    %v194 = vadd.f32 %v75, %v193
    %195 = vmatmul.bf16.gmra.mxu0 %v109
    %v196 = vpop.f32.mrf.mxu0
    %v197 = vadd.f32 %v75, %v196
    %v198 = vpop.f32.mrf.mxu0
    %v199 = vadd.f32 %v75, %v198
    %200 = vmatmul.bf16.gmra.mxu0 %v112
    %v201 = vpop.f32.mrf.mxu0
    %v202 = vadd.f32 %v75, %v201
    %v203 = vpop.f32.mrf.mxu0
    %v204 = vadd.f32 %v75, %v203
    %205 = vmatmul.bf16.gmra.mxu0 %v115
    %v206 = vpop.f32.mrf.mxu0
    %v207 = vadd.f32 %v75, %v206
    %v208 = vpop.f32.mrf.mxu0
    %v209 = vadd.f32 %v75, %v208
    %210 = vmatmul.bf16.gmra.mxu0 %v118
    %v211 = vpop.f32.mrf.mxu0
    %v212 = vadd.f32 %v75, %v211
    %v213 = vpop.f32.mrf.mxu0
    %v214 = vadd.f32 %v75, %v213
    %215 = vmatmul.bf16.gmra.mxu0 %v121
    %v216 = vpop.f32.mrf.mxu0
    %v217 = vadd.f32 %v75, %v216
    %v218 = vpop.f32.mrf.mxu0
    %v219 = vadd.f32 %v75, %v218
    %220 = vdwg.mxu0
    %v221 = vmul.f32 %v133, 0.2
    %v222 = vmul.f32 %v182, 0.2
    %v223 = vmul.f32 %v135, 0.2
    %v224 = vmul.f32 %v184, 0.2
    %v225 = vmul.f32 %v138, 0.2
    %v226 = vmul.f32 %v187, 0.2
    %v227 = vmul.f32 %v140, 0.2
    %v228 = vmul.f32 %v189, 0.2
    %v229 = vmul.f32 %v143, 0.2
    %v230 = vmul.f32 %v192, 0.2
    %v231 = vmul.f32 %v145, 0.2
    %v232 = vmul.f32 %v194, 0.2
    %v233 = vmul.f32 %v148, 0.2
    %v234 = vmul.f32 %v197, 0.2
    %v235 = vmul.f32 %v150, 0.2
    %v236 = vmul.f32 %v199, 0.2
    %v237 = vmul.f32 %v153, 0.2
    %v238 = vmul.f32 %v202, 0.2
    %v239 = vmul.f32 %v155, 0.2
    %v240 = vmul.f32 %v204, 0.2
    %v241 = vmul.f32 %v158, 0.2
    %v242 = vmul.f32 %v207, 0.2
    %v243 = vmul.f32 %v160, 0.2
    %v244 = vmul.f32 %v209, 0.2
    %v245 = vmul.f32 %v163, 0.2
    %v246 = vmul.f32 %v212, 0.2
    %v247 = vmul.f32 %v165, 0.2
    %v248 = vmul.f32 %v214, 0.2
    %v249 = vmul.f32 %v168, 0.2
    %v250 = vmul.f32 %v217, 0.2
    %v251 = vmul.f32 %v170, 0.2
    %v252 = vmul.f32 %v219, 0.2
    %v253 = vmax.f32 %v133, %v221
    %v254 = vmax.f32 %v182, %v222
    %v255 = vmax.f32 %v135, %v223
    %v256 = vmax.f32 %v184, %v224
    %v257 = vmax.f32 %v138, %v225
    %v258 = vmax.f32 %v187, %v226
    %v259 = vmax.f32 %v140, %v227
    %v260 = vmax.f32 %v189, %v228
    %v261 = vmax.f32 %v143, %v229
    %v262 = vmax.f32 %v192, %v230
    %v263 = vmax.f32 %v145, %v231
    %v264 = vmax.f32 %v194, %v232
    %v265 = vmax.f32 %v148, %v233
    %v266 = vmax.f32 %v197, %v234
    %v267 = vmax.f32 %v150, %v235
    %v268 = vmax.f32 %v199, %v236
    %v269 = vmax.f32 %v153, %v237
    %v270 = vmax.f32 %v202, %v238
    %v271 = vmax.f32 %v155, %v239
    %v272 = vmax.f32 %v204, %v240
    %v273 = vmax.f32 %v158, %v241
    %v274 = vmax.f32 %v207, %v242
    %v275 = vmax.f32 %v160, %v243
    %v276 = vmax.f32 %v209, %v244
    %v277 = vmax.f32 %v163, %v245
    %v278 = vmax.f32 %v212, %v246
    %v279 = vmax.f32 %v165, %v247
    %v280 = vmax.f32 %v214, %v248
    %v281 = vmax.f32 %v168, %v249
    %v282 = vmax.f32 %v217, %v250
    %v283 = vmax.f32 %v170, %v251
    %v284 = vmax.f32 %v219, %v252
    %285 = vxpose.xlu0.b32.start [1/16] %v253, 128
    %286 = vxpose.xlu0.b32.cont [2/16] %v255, 128
    %287 = vxpose.xlu0.b32.cont [3/16] %v257, 128
    %288 = vxpose.xlu0.b32.cont [4/16] %v259, 128
    %289 = vxpose.xlu0.b32.cont [5/16] %v261, 128
    %290 = vxpose.xlu0.b32.cont [6/16] %v263, 128
    %291 = vxpose.xlu0.b32.cont [7/16] %v265, 128
    %292 = vxpose.xlu0.b32.cont [8/16] %v267, 128
    %293 = vxpose.xlu0.b32.cont [9/16] %v269, 128
    %294 = vxpose.xlu0.b32.cont [10/16] %v271, 128
    %295 = vxpose.xlu0.b32.cont [11/16] %v273, 128
    %296 = vxpose.xlu0.b32.cont [12/16] %v275, 128
    %297 = vxpose.xlu0.b32.cont [13/16] %v277, 128
    %298 = vxpose.xlu0.b32.cont [14/16] %v279, 128
    %299 = vxpose.xlu0.b32.cont [15/16] %v281, 128
    %300 = vxpose.xlu0.b32.end [16/16] %v283, 128
    %v301 = vpop.trf.xlu0
    %v302 = vpop.trf.xlu0
    %v303 = vpop.trf.xlu0
    %v304 = vpop.trf.xlu0
    %v305 = vpop.trf.xlu0
    %v306 = vpop.trf.xlu0
    %v307 = vpop.trf.xlu0
    %v308 = vpop.trf.xlu0
    %v309 = vpop.trf.xlu0
    %v310 = vpop.trf.xlu0
    %v311 = vpop.trf.xlu0
    %v312 = vpop.trf.xlu0
    %v313 = vpop.trf.xlu0
    %v314 = vpop.trf.xlu0
    %v315 = vpop.trf.xlu0
    %v316 = vpop.trf.xlu0
    %317 = vxpose.xlu0.b32.start [1/16] %v254, 128
    %318 = vxpose.xlu0.b32.cont [2/16] %v256, 128
    %319 = vxpose.xlu0.b32.cont [3/16] %v258, 128
    %320 = vxpose.xlu0.b32.cont [4/16] %v260, 128
    %321 = vxpose.xlu0.b32.cont [5/16] %v262, 128
    %322 = vxpose.xlu0.b32.cont [6/16] %v264, 128
    %323 = vxpose.xlu0.b32.cont [7/16] %v266, 128
    %324 = vxpose.xlu0.b32.cont [8/16] %v268, 128
    %325 = vxpose.xlu0.b32.cont [9/16] %v270, 128
    %326 = vxpose.xlu0.b32.cont [10/16] %v272, 128
    %327 = vxpose.xlu0.b32.cont [11/16] %v274, 128
    %328 = vxpose.xlu0.b32.cont [12/16] %v276, 128
    %329 = vxpose.xlu0.b32.cont [13/16] %v278, 128
    %330 = vxpose.xlu0.b32.cont [14/16] %v280, 128
    %331 = vxpose.xlu0.b32.cont [15/16] %v282, 128
    %332 = vxpose.xlu0.b32.end [16/16] %v284, 128
    %v333 = vpop.trf.xlu0
    %v334 = vpop.trf.xlu0
    %v335 = vpop.trf.xlu0
    %v336 = vpop.trf.xlu0
    %v337 = vpop.trf.xlu0
    %v338 = vpop.trf.xlu0
    %v339 = vpop.trf.xlu0
    %v340 = vpop.trf.xlu0
    %v341 = vpop.trf.xlu0
    %v342 = vpop.trf.xlu0
    %v343 = vpop.trf.xlu0
    %v344 = vpop.trf.xlu0
    %v345 = vpop.trf.xlu0
    %v346 = vpop.trf.xlu0
    %v347 = vpop.trf.xlu0
    %v348 = vpop.trf.xlu0
    %v349 = vpack.c.bf16 %v302, %v301
    %v350 = vpack.c.bf16 %v304, %v303
    %v351 = vpack.c.bf16 %v306, %v305
    %v352 = vpack.c.bf16 %v308, %v307
    %v353 = vpack.c.bf16 %v310, %v309
    %v354 = vpack.c.bf16 %v312, %v311
    %v355 = vpack.c.bf16 %v314, %v313
    %v356 = vpack.c.bf16 %v316, %v315
    %v357 = vpack.c.bf16 %v334, %v333
    %v358 = vpack.c.bf16 %v336, %v335
    %v359 = vpack.c.bf16 %v338, %v337
    %v360 = vpack.c.bf16 %v340, %v339
    %v361 = vpack.c.bf16 %v342, %v341
    %v362 = vpack.c.bf16 %v344, %v343
    %v363 = vpack.c.bf16 %v346, %v345
    %v364 = vpack.c.bf16 %v348, %v347
    %v365 = vld [vmem:[%s3] sm:$0xff]
    %v366 = vld [vmem:[%s3 + $0x8] sm:$0xff]
    %v367 = vld [vmem:[%s3 + $0x10] sm:$0xff]
    %v368 = vld [vmem:[%s3 + $0x18] sm:$0xff]
    %v369 = vld [vmem:[%s3 + $0x20] sm:$0xff]
    %v370 = vld [vmem:[%s3 + $0x28] sm:$0xff]
    %v371 = vld [vmem:[%s3 + $0x30] sm:$0xff]
    %v372 = vld [vmem:[%s3 + $0x38] sm:$0xff]
    %v373 = vld [vmem:[%s3 + $0x40] sm:$0xff]
    %v374 = vld [vmem:[%s3 + $0x48] sm:$0xff]
    %v375 = vld [vmem:[%s3 + $0x50] sm:$0xff]
    %v376 = vld [vmem:[%s3 + $0x58] sm:$0xff]
    %v377 = vld [vmem:[%s3 + $0x60] sm:$0xff]
    %v378 = vld [vmem:[%s3 + $0x68] sm:$0xff]
    %v379 = vld [vmem:[%s3 + $0x70] sm:$0xff]
    %v380 = vld [vmem:[%s3 + $0x78] sm:$0xff]
    %v381 = vld [vmem:[%s3 + $0x80] sm:$0xff]
    %v382 = vld [vmem:[%s3 + $0x88] sm:$0xff]
    %v383 = vld [vmem:[%s3 + $0x90] sm:$0xff]
    %v384 = vld [vmem:[%s3 + $0x98] sm:$0xff]
    %v385 = vld [vmem:[%s3 + $0xa0] sm:$0xff]
    %v386 = vld [vmem:[%s3 + $0xa8] sm:$0xff]
    %v387 = vld [vmem:[%s3 + $0xb0] sm:$0xff]
    %v388 = vld [vmem:[%s3 + $0xb8] sm:$0xff]
    %v389 = vld [vmem:[%s3 + $0xc0] sm:$0xff]
    %v390 = vld [vmem:[%s3 + $0xc8] sm:$0xff]
    %v391 = vld [vmem:[%s3 + $0xd0] sm:$0xff]
    %v392 = vld [vmem:[%s3 + $0xd8] sm:$0xff]
    %v393 = vld [vmem:[%s3 + $0xe0] sm:$0xff]
    %v394 = vld [vmem:[%s3 + $0xe8] sm:$0xff]
    %v395 = vld [vmem:[%s3 + $0xf0] sm:$0xff]
    %v396 = vld [vmem:[%s3 + $0xf8] sm:$0xff]
    %v429 = vunpack.c.l.b16 %v365
    %v430 = vunpack.c.h.b16 %v365
    %v431 = vunpack.c.l.b16 %v366
    %v432 = vunpack.c.h.b16 %v366
    %v433 = vunpack.c.l.b16 %v367
    %v434 = vunpack.c.h.b16 %v367
    %v435 = vunpack.c.l.b16 %v368
    %v436 = vunpack.c.h.b16 %v368
    %v437 = vunpack.c.l.b16 %v369
    %v438 = vunpack.c.h.b16 %v369
    %v439 = vunpack.c.l.b16 %v370
    %v440 = vunpack.c.h.b16 %v370
    %v441 = vunpack.c.l.b16 %v371
    %v442 = vunpack.c.h.b16 %v371
    %v443 = vunpack.c.l.b16 %v372
    %v444 = vunpack.c.h.b16 %v372
    %v445 = vunpack.c.l.b16 %v373
    %v446 = vunpack.c.h.b16 %v373
    %v447 = vunpack.c.l.b16 %v374
    %v448 = vunpack.c.h.b16 %v374
    %v449 = vunpack.c.l.b16 %v375
    %v450 = vunpack.c.h.b16 %v375
    %v451 = vunpack.c.l.b16 %v376
    %v452 = vunpack.c.h.b16 %v376
    %v453 = vunpack.c.l.b16 %v377
    %v454 = vunpack.c.h.b16 %v377
    %v455 = vunpack.c.l.b16 %v378
    %v456 = vunpack.c.h.b16 %v378
    %v457 = vunpack.c.l.b16 %v379
    %v458 = vunpack.c.h.b16 %v379
    %v459 = vunpack.c.l.b16 %v380
    %v460 = vunpack.c.h.b16 %v380
    %v461 = vunpack.c.l.b16 %v381
    %v462 = vunpack.c.h.b16 %v381
    %v463 = vunpack.c.l.b16 %v382
    %v464 = vunpack.c.h.b16 %v382
    %v465 = vunpack.c.l.b16 %v383
    %v466 = vunpack.c.h.b16 %v383
    %v467 = vunpack.c.l.b16 %v384
    %v468 = vunpack.c.h.b16 %v384
    %v469 = vunpack.c.l.b16 %v385
    %v470 = vunpack.c.h.b16 %v385
    %v471 = vunpack.c.l.b16 %v386
    %v472 = vunpack.c.h.b16 %v386
    %v473 = vunpack.c.l.b16 %v387
    %v474 = vunpack.c.h.b16 %v387
    %v475 = vunpack.c.l.b16 %v388
    %v476 = vunpack.c.h.b16 %v388
    %v477 = vunpack.c.l.b16 %v389
    %v478 = vunpack.c.h.b16 %v389
    %v479 = vunpack.c.l.b16 %v390
    %v480 = vunpack.c.h.b16 %v390
    %v481 = vunpack.c.l.b16 %v391
    %v482 = vunpack.c.h.b16 %v391
    %v483 = vunpack.c.l.b16 %v392
    %v484 = vunpack.c.h.b16 %v392
    %v485 = vunpack.c.l.b16 %v393
    %v486 = vunpack.c.h.b16 %v393
    %v487 = vunpack.c.l.b16 %v394
    %v488 = vunpack.c.h.b16 %v394
    %v489 = vunpack.c.l.b16 %v395
    %v490 = vunpack.c.h.b16 %v395
    %v491 = vunpack.c.l.b16 %v396
    %v492 = vunpack.c.h.b16 %v396
    %v493 = vpack.c.b16 %v431, %v429
    %v494 = vpack.c.b16 %v432, %v430
    %v495 = vpack.c.b16 %v435, %v433
    %v496 = vpack.c.b16 %v436, %v434
    %v497 = vpack.c.b16 %v439, %v437
    %v498 = vpack.c.b16 %v440, %v438
    %v499 = vpack.c.b16 %v443, %v441
    %v500 = vpack.c.b16 %v444, %v442
    %v501 = vpack.c.b16 %v447, %v445
    %v502 = vpack.c.b16 %v448, %v446
    %v503 = vpack.c.b16 %v451, %v449
    %v504 = vpack.c.b16 %v452, %v450
    %v505 = vpack.c.b16 %v455, %v453
    %v506 = vpack.c.b16 %v456, %v454
    %v507 = vpack.c.b16 %v459, %v457
    %v508 = vpack.c.b16 %v460, %v458
    %v509 = vpack.c.b16 %v463, %v461
    %v510 = vpack.c.b16 %v464, %v462
    %v511 = vpack.c.b16 %v467, %v465
    %v512 = vpack.c.b16 %v468, %v466
    %v513 = vpack.c.b16 %v471, %v469
    %v514 = vpack.c.b16 %v472, %v470
    %v515 = vpack.c.b16 %v475, %v473
    %v516 = vpack.c.b16 %v476, %v474
    %v517 = vpack.c.b16 %v479, %v477
    %v518 = vpack.c.b16 %v480, %v478
    %v519 = vpack.c.b16 %v483, %v481
    %v520 = vpack.c.b16 %v484, %v482
    %v521 = vpack.c.b16 %v487, %v485
    %v522 = vpack.c.b16 %v488, %v486
    %v523 = vpack.c.b16 %v491, %v489
    %v524 = vpack.c.b16 %v492, %v490
    %557 = vmatpush.bf16.msra.mxu0 %v356
    %558 = vmatpush.bf16.msra.mxu0 %v355
    %559 = vmatpush.bf16.msra.mxu0 %v354
    %560 = vmatpush.bf16.msra.mxu0 %v353
    %561 = vmatpush.bf16.msra.mxu0 %v352
    %562 = vmatpush.bf16.msra.mxu0 %v351
    %563 = vmatpush.bf16.msra.mxu0 %v350
    %564 = vmatpush.bf16.msra.mxu0 %v349
    %565 = vmatmul.bf16.gmra.mxu0 %v493
    %v566 = vpop.f32.mrf.mxu0
    %v567 = vadd.f32 0.0, %v566
    %v568 = vpop.f32.mrf.mxu0
    %v569 = vadd.f32 0.0, %v568
    %570 = vmatmul.bf16.gmra.mxu0 %v495
    %v571 = vpop.f32.mrf.mxu0
    %v572 = vadd.f32 0.0, %v571
    %v573 = vpop.f32.mrf.mxu0
    %v574 = vadd.f32 0.0, %v573
    %575 = vmatmul.bf16.gmra.mxu0 %v497
    %v576 = vpop.f32.mrf.mxu0
    %v577 = vadd.f32 0.0, %v576
    %v578 = vpop.f32.mrf.mxu0
    %v579 = vadd.f32 0.0, %v578
    %580 = vmatmul.bf16.gmra.mxu0 %v499
    %v581 = vpop.f32.mrf.mxu0
    %v582 = vadd.f32 0.0, %v581
    %v583 = vpop.f32.mrf.mxu0
    %v584 = vadd.f32 0.0, %v583
    %585 = vmatmul.bf16.gmra.mxu0 %v501
    %v586 = vpop.f32.mrf.mxu0
    %v587 = vadd.f32 0.0, %v586
    %v588 = vpop.f32.mrf.mxu0
    %v589 = vadd.f32 0.0, %v588
    %590 = vmatmul.bf16.gmra.mxu0 %v503
    %v591 = vpop.f32.mrf.mxu0
    %v592 = vadd.f32 0.0, %v591
    %v593 = vpop.f32.mrf.mxu0
    %v594 = vadd.f32 0.0, %v593
    %595 = vmatmul.bf16.gmra.mxu0 %v505
    %v596 = vpop.f32.mrf.mxu0
    %v597 = vadd.f32 0.0, %v596
    %v598 = vpop.f32.mrf.mxu0
    %v599 = vadd.f32 0.0, %v598
    %600 = vmatmul.bf16.gmra.mxu0 %v507
    %v601 = vpop.f32.mrf.mxu0
    %v602 = vadd.f32 0.0, %v601
    %v603 = vpop.f32.mrf.mxu0
    %v604 = vadd.f32 0.0, %v603
    %605 = vmatmul.bf16.gmra.mxu0 %v509
    %v606 = vpop.f32.mrf.mxu0
    %v607 = vadd.f32 0.0, %v606
    %v608 = vpop.f32.mrf.mxu0
    %v609 = vadd.f32 0.0, %v608
    %610 = vmatmul.bf16.gmra.mxu0 %v511
    %v611 = vpop.f32.mrf.mxu0
    %v612 = vadd.f32 0.0, %v611
    %v613 = vpop.f32.mrf.mxu0
    %v614 = vadd.f32 0.0, %v613
    %615 = vmatmul.bf16.gmra.mxu0 %v513
    %v616 = vpop.f32.mrf.mxu0
    %v617 = vadd.f32 0.0, %v616
    %v618 = vpop.f32.mrf.mxu0
    %v619 = vadd.f32 0.0, %v618
    %620 = vmatmul.bf16.gmra.mxu0 %v515
    %v621 = vpop.f32.mrf.mxu0
    %v622 = vadd.f32 0.0, %v621
    %v623 = vpop.f32.mrf.mxu0
    %v624 = vadd.f32 0.0, %v623
    %625 = vmatmul.bf16.gmra.mxu0 %v517
    %v626 = vpop.f32.mrf.mxu0
    %v627 = vadd.f32 0.0, %v626
    %v628 = vpop.f32.mrf.mxu0
    %v629 = vadd.f32 0.0, %v628
    %630 = vmatmul.bf16.gmra.mxu0 %v519
    %v631 = vpop.f32.mrf.mxu0
    %v632 = vadd.f32 0.0, %v631
    %v633 = vpop.f32.mrf.mxu0
    %v634 = vadd.f32 0.0, %v633
    %635 = vmatmul.bf16.gmra.mxu0 %v521
    %v636 = vpop.f32.mrf.mxu0
    %v637 = vadd.f32 0.0, %v636
    %v638 = vpop.f32.mrf.mxu0
    %v639 = vadd.f32 0.0, %v638
    %640 = vmatmul.bf16.gmra.mxu0 %v523
    %v641 = vpop.f32.mrf.mxu0
    %v642 = vadd.f32 0.0, %v641
    %v643 = vpop.f32.mrf.mxu0
    %v644 = vadd.f32 0.0, %v643
    %645 = vdwg.mxu0
    %646 = vmatpush.bf16.msra.mxu0 %v364
    %647 = vmatpush.bf16.msra.mxu0 %v363
    %648 = vmatpush.bf16.msra.mxu0 %v362
    %649 = vmatpush.bf16.msra.mxu0 %v361
    %650 = vmatpush.bf16.msra.mxu0 %v360
    %651 = vmatpush.bf16.msra.mxu0 %v359
    %652 = vmatpush.bf16.msra.mxu0 %v358
    %653 = vmatpush.bf16.msra.mxu0 %v357
    %654 = vmatmul.bf16.gmra.mxu0 %v494
    %v655 = vpop.f32.mrf.mxu0
    %v656 = vadd.f32 %v567, %v655
    %v657 = vpop.f32.mrf.mxu0
    %v658 = vadd.f32 %v569, %v657
    %659 = vmatmul.bf16.gmra.mxu0 %v496
    %v660 = vpop.f32.mrf.mxu0
    %v661 = vadd.f32 %v572, %v660
    %v662 = vpop.f32.mrf.mxu0
    %v663 = vadd.f32 %v574, %v662
    %664 = vmatmul.bf16.gmra.mxu0 %v498
    %v665 = vpop.f32.mrf.mxu0
    %v666 = vadd.f32 %v577, %v665
    %v667 = vpop.f32.mrf.mxu0
    %v668 = vadd.f32 %v579, %v667
    %669 = vmatmul.bf16.gmra.mxu0 %v500
    %v670 = vpop.f32.mrf.mxu0
    %v671 = vadd.f32 %v582, %v670
    %v672 = vpop.f32.mrf.mxu0
    %v673 = vadd.f32 %v584, %v672
    %674 = vmatmul.bf16.gmra.mxu0 %v502
    %v675 = vpop.f32.mrf.mxu0
    %v676 = vadd.f32 %v587, %v675
    %v677 = vpop.f32.mrf.mxu0
    %v678 = vadd.f32 %v589, %v677
    %679 = vmatmul.bf16.gmra.mxu0 %v504
    %v680 = vpop.f32.mrf.mxu0
    %v681 = vadd.f32 %v592, %v680
    %v682 = vpop.f32.mrf.mxu0
    %v683 = vadd.f32 %v594, %v682
    %684 = vmatmul.bf16.gmra.mxu0 %v506
    %v685 = vpop.f32.mrf.mxu0
    %v686 = vadd.f32 %v597, %v685
    %v687 = vpop.f32.mrf.mxu0
    %v688 = vadd.f32 %v599, %v687
    %689 = vmatmul.bf16.gmra.mxu0 %v508
    %v690 = vpop.f32.mrf.mxu0
    %v691 = vadd.f32 %v602, %v690
    %v692 = vpop.f32.mrf.mxu0
    %v693 = vadd.f32 %v604, %v692
    %694 = vmatmul.bf16.gmra.mxu0 %v510
    %v695 = vpop.f32.mrf.mxu0
    %v696 = vadd.f32 %v607, %v695
    %v697 = vpop.f32.mrf.mxu0
    %v698 = vadd.f32 %v609, %v697
    %699 = vmatmul.bf16.gmra.mxu0 %v512
    %v700 = vpop.f32.mrf.mxu0
    %v701 = vadd.f32 %v612, %v700
    %v702 = vpop.f32.mrf.mxu0
    %v703 = vadd.f32 %v614, %v702
    %704 = vmatmul.bf16.gmra.mxu0 %v514
    %v705 = vpop.f32.mrf.mxu0
    %v706 = vadd.f32 %v617, %v705
    %v707 = vpop.f32.mrf.mxu0
    %v708 = vadd.f32 %v619, %v707
    %709 = vmatmul.bf16.gmra.mxu0 %v516
    %v710 = vpop.f32.mrf.mxu0
    %v711 = vadd.f32 %v622, %v710
    %v712 = vpop.f32.mrf.mxu0
    %v713 = vadd.f32 %v624, %v712
    %714 = vmatmul.bf16.gmra.mxu0 %v518
    %v715 = vpop.f32.mrf.mxu0
    %v716 = vadd.f32 %v627, %v715
    %v717 = vpop.f32.mrf.mxu0
    %v718 = vadd.f32 %v629, %v717
    %719 = vmatmul.bf16.gmra.mxu0 %v520
    %v720 = vpop.f32.mrf.mxu0
    %v721 = vadd.f32 %v632, %v720
    %v722 = vpop.f32.mrf.mxu0
    %v723 = vadd.f32 %v634, %v722
    %724 = vmatmul.bf16.gmra.mxu0 %v522
    %v725 = vpop.f32.mrf.mxu0
    %v726 = vadd.f32 %v637, %v725
    %v727 = vpop.f32.mrf.mxu0
    %v728 = vadd.f32 %v639, %v727
    %729 = vmatmul.bf16.gmra.mxu0 %v524
    %v730 = vpop.f32.mrf.mxu0
    %v731 = vadd.f32 %v642, %v730
    %v732 = vpop.f32.mrf.mxu0
    %v733 = vadd.f32 %v644, %v732
    %734 = vdwg.mxu0
    %v735 = vpack.c.bf16 %v656, %v656
    %v736 = vpack.c.bf16 %v658, %v658
    %v737 = vpack.c.bf16 %v661, %v661
    %v738 = vpack.c.bf16 %v663, %v663
    %v739 = vpack.c.bf16 %v666, %v666
    %v740 = vpack.c.bf16 %v668, %v668
    %v741 = vpack.c.bf16 %v671, %v671
    %v742 = vpack.c.bf16 %v673, %v673
    %v743 = vpack.c.bf16 %v676, %v676
    %v744 = vpack.c.bf16 %v678, %v678
    %v745 = vpack.c.bf16 %v681, %v681
    %v746 = vpack.c.bf16 %v683, %v683
    %v747 = vpack.c.bf16 %v686, %v686
    %v748 = vpack.c.bf16 %v688, %v688
    %v749 = vpack.c.bf16 %v691, %v691
    %v750 = vpack.c.bf16 %v693, %v693
    %v751 = vpack.c.bf16 %v696, %v696
    %v752 = vpack.c.bf16 %v698, %v698
    %v753 = vpack.c.bf16 %v701, %v701
    %v754 = vpack.c.bf16 %v703, %v703
    %v755 = vpack.c.bf16 %v706, %v706
    %v756 = vpack.c.bf16 %v708, %v708
    %v757 = vpack.c.bf16 %v711, %v711
    %v758 = vpack.c.bf16 %v713, %v713
    %v759 = vpack.c.bf16 %v716, %v716
    %v760 = vpack.c.bf16 %v718, %v718
    %v761 = vpack.c.bf16 %v721, %v721
    %v762 = vpack.c.bf16 %v723, %v723
    %v763 = vpack.c.bf16 %v726, %v726
    %v764 = vpack.c.bf16 %v728, %v728
    %v765 = vpack.c.bf16 %v731, %v731
    %v766 = vpack.c.bf16 %v733, %v733
    %v767 = vld [vmem:[%s4] sm:$0xf]
    %v768 = vld [vmem:[%s4 + $0x4] sm:$0xf]
    %v769 = vld [vmem:[%s4 + $0x8] sm:$0xf]
    %v770 = vld [vmem:[%s4 + $0xc] sm:$0xf]
    %v771 = vld [vmem:[%s4 + $0x10] sm:$0xf]
    %v772 = vld [vmem:[%s4 + $0x14] sm:$0xf]
    %v773 = vld [vmem:[%s4 + $0x18] sm:$0xf]
    %v774 = vld [vmem:[%s4 + $0x1c] sm:$0xf]
    %v775 = vld [vmem:[%s4 + $0x20] sm:$0xf]
    %v776 = vld [vmem:[%s4 + $0x24] sm:$0xf]
    %v777 = vld [vmem:[%s4 + $0x28] sm:$0xf]
    %v778 = vld [vmem:[%s4 + $0x2c] sm:$0xf]
    %v779 = vld [vmem:[%s4 + $0x30] sm:$0xf]
    %v780 = vld [vmem:[%s4 + $0x34] sm:$0xf]
    %v781 = vld [vmem:[%s4 + $0x38] sm:$0xf]
    %v782 = vld [vmem:[%s4 + $0x3c] sm:$0xf]
    %v783 = vld [vmem:[%s4 + $0x40] sm:$0xf]
    %v784 = vld [vmem:[%s4 + $0x44] sm:$0xf]
    %v785 = vld [vmem:[%s4 + $0x48] sm:$0xf]
    %v786 = vld [vmem:[%s4 + $0x4c] sm:$0xf]
    %v787 = vld [vmem:[%s4 + $0x50] sm:$0xf]
    %v788 = vld [vmem:[%s4 + $0x54] sm:$0xf]
    %v789 = vld [vmem:[%s4 + $0x58] sm:$0xf]
    %v790 = vld [vmem:[%s4 + $0x5c] sm:$0xf]
    %v791 = vld [vmem:[%s4 + $0x60] sm:$0xf]
    %v792 = vld [vmem:[%s4 + $0x64] sm:$0xf]
    %v793 = vld [vmem:[%s4 + $0x68] sm:$0xf]
    %v794 = vld [vmem:[%s4 + $0x6c] sm:$0xf]
    %v795 = vld [vmem:[%s4 + $0x70] sm:$0xf]
    %v796 = vld [vmem:[%s4 + $0x74] sm:$0xf]
    %v797 = vld [vmem:[%s4 + $0x78] sm:$0xf]
    %v798 = vld [vmem:[%s4 + $0x7c] sm:$0xf]
    %800 = vset.pattern.permute.xlu0 0
    %801 = vperm.xlu0 %800, %v767
    %v802 = vpop.permute.xlu0 %801
    %v805 = vunpack.c.l.s4 839922192
    %v806 = vunpack.c.0.s8 %v805
    %v807 = vperm.slane %v802, %v806
    %809 = vset.pattern.permute.xlu0 0
    %810 = vperm.xlu0 %809, %v768
    %v811 = vpop.permute.xlu0 %810
    %v814 = vunpack.c.l.s4 839922192
    %v815 = vunpack.c.0.s8 %v814
    %v816 = vperm.slane %v811, %v815
    %818 = vset.pattern.permute.xlu0 0
    %819 = vperm.xlu0 %818, %v769
    %v820 = vpop.permute.xlu0 %819
    %v823 = vunpack.c.l.s4 839922192
    %v824 = vunpack.c.0.s8 %v823
    %v825 = vperm.slane %v820, %v824
    %827 = vset.pattern.permute.xlu0 0
    %828 = vperm.xlu0 %827, %v770
    %v829 = vpop.permute.xlu0 %828
    %v832 = vunpack.c.l.s4 839922192
    %v833 = vunpack.c.0.s8 %v832
    %v834 = vperm.slane %v829, %v833
    %836 = vset.pattern.permute.xlu0 0
    %837 = vperm.xlu0 %836, %v771
    %v838 = vpop.permute.xlu0 %837
    %v841 = vunpack.c.l.s4 839922192
    %v842 = vunpack.c.0.s8 %v841
    %v843 = vperm.slane %v838, %v842
    %845 = vset.pattern.permute.xlu0 0
    %846 = vperm.xlu0 %845, %v772
    %v847 = vpop.permute.xlu0 %846
    %v850 = vunpack.c.l.s4 839922192
    %v851 = vunpack.c.0.s8 %v850
    %v852 = vperm.slane %v847, %v851
    %854 = vset.pattern.permute.xlu0 0
    %855 = vperm.xlu0 %854, %v773
    %v856 = vpop.permute.xlu0 %855
    %v859 = vunpack.c.l.s4 839922192
    %v860 = vunpack.c.0.s8 %v859
    %v861 = vperm.slane %v856, %v860
    %863 = vset.pattern.permute.xlu0 0
    %864 = vperm.xlu0 %863, %v774
    %v865 = vpop.permute.xlu0 %864
    %v868 = vunpack.c.l.s4 839922192
    %v869 = vunpack.c.0.s8 %v868
    %v870 = vperm.slane %v865, %v869
    %872 = vset.pattern.permute.xlu0 0
    %873 = vperm.xlu0 %872, %v775
    %v874 = vpop.permute.xlu0 %873
    %v877 = vunpack.c.l.s4 839922192
    %v878 = vunpack.c.0.s8 %v877
    %v879 = vperm.slane %v874, %v878
    %881 = vset.pattern.permute.xlu0 0
    %882 = vperm.xlu0 %881, %v776
    %v883 = vpop.permute.xlu0 %882
    %v886 = vunpack.c.l.s4 839922192
    %v887 = vunpack.c.0.s8 %v886
    %v888 = vperm.slane %v883, %v887
    %890 = vset.pattern.permute.xlu0 0
    %891 = vperm.xlu0 %890, %v777
    %v892 = vpop.permute.xlu0 %891
    %v895 = vunpack.c.l.s4 839922192
    %v896 = vunpack.c.0.s8 %v895
    %v897 = vperm.slane %v892, %v896
    %899 = vset.pattern.permute.xlu0 0
    %900 = vperm.xlu0 %899, %v778
    %v901 = vpop.permute.xlu0 %900
    %v904 = vunpack.c.l.s4 839922192
    %v905 = vunpack.c.0.s8 %v904
    %v906 = vperm.slane %v901, %v905
    %908 = vset.pattern.permute.xlu0 0
    %909 = vperm.xlu0 %908, %v779
    %v910 = vpop.permute.xlu0 %909
    %v913 = vunpack.c.l.s4 839922192
    %v914 = vunpack.c.0.s8 %v913
    %v915 = vperm.slane %v910, %v914
    %917 = vset.pattern.permute.xlu0 0
    %918 = vperm.xlu0 %917, %v780
    %v919 = vpop.permute.xlu0 %918
    %v922 = vunpack.c.l.s4 839922192
    %v923 = vunpack.c.0.s8 %v922
    %v924 = vperm.slane %v919, %v923
    %926 = vset.pattern.permute.xlu0 0
    %927 = vperm.xlu0 %926, %v781
    %v928 = vpop.permute.xlu0 %927
    %v931 = vunpack.c.l.s4 839922192
    %v932 = vunpack.c.0.s8 %v931
    %v933 = vperm.slane %v928, %v932
    %935 = vset.pattern.permute.xlu0 0
    %936 = vperm.xlu0 %935, %v782
    %v937 = vpop.permute.xlu0 %936
    %v940 = vunpack.c.l.s4 839922192
    %v941 = vunpack.c.0.s8 %v940
    %v942 = vperm.slane %v937, %v941
    %944 = vset.pattern.permute.xlu0 0
    %945 = vperm.xlu0 %944, %v783
    %v946 = vpop.permute.xlu0 %945
    %v949 = vunpack.c.l.s4 839922192
    %v950 = vunpack.c.0.s8 %v949
    %v951 = vperm.slane %v946, %v950
    %953 = vset.pattern.permute.xlu0 0
    %954 = vperm.xlu0 %953, %v784
    %v955 = vpop.permute.xlu0 %954
    %v958 = vunpack.c.l.s4 839922192
    %v959 = vunpack.c.0.s8 %v958
    %v960 = vperm.slane %v955, %v959
    %962 = vset.pattern.permute.xlu0 0
    %963 = vperm.xlu0 %962, %v785
    %v964 = vpop.permute.xlu0 %963
    %v967 = vunpack.c.l.s4 839922192
    %v968 = vunpack.c.0.s8 %v967
    %v969 = vperm.slane %v964, %v968
    %971 = vset.pattern.permute.xlu0 0
    %972 = vperm.xlu0 %971, %v786
    %v973 = vpop.permute.xlu0 %972
    %v976 = vunpack.c.l.s4 839922192
    %v977 = vunpack.c.0.s8 %v976
    %v978 = vperm.slane %v973, %v977
    %980 = vset.pattern.permute.xlu0 0
    %981 = vperm.xlu0 %980, %v787
    %v982 = vpop.permute.xlu0 %981
    %v985 = vunpack.c.l.s4 839922192
    %v986 = vunpack.c.0.s8 %v985
    %v987 = vperm.slane %v982, %v986
    %989 = vset.pattern.permute.xlu0 0
    %990 = vperm.xlu0 %989, %v788
    %v991 = vpop.permute.xlu0 %990
    %v994 = vunpack.c.l.s4 839922192
    %v995 = vunpack.c.0.s8 %v994
    %v996 = vperm.slane %v991, %v995
    %998 = vset.pattern.permute.xlu0 0
    %999 = vperm.xlu0 %998, %v789
    %v1000 = vpop.permute.xlu0 %999
    %v1003 = vunpack.c.l.s4 839922192
    %v1004 = vunpack.c.0.s8 %v1003
    %v1005 = vperm.slane %v1000, %v1004
    %1007 = vset.pattern.permute.xlu0 0
    %1008 = vperm.xlu0 %1007, %v790
    %v1009 = vpop.permute.xlu0 %1008
    %v1012 = vunpack.c.l.s4 839922192
    %v1013 = vunpack.c.0.s8 %v1012
    %v1014 = vperm.slane %v1009, %v1013
    %1016 = vset.pattern.permute.xlu0 0
    %1017 = vperm.xlu0 %1016, %v791
    %v1018 = vpop.permute.xlu0 %1017
    %v1021 = vunpack.c.l.s4 839922192
    %v1022 = vunpack.c.0.s8 %v1021
    %v1023 = vperm.slane %v1018, %v1022
    %1025 = vset.pattern.permute.xlu0 0
    %1026 = vperm.xlu0 %1025, %v792
    %v1027 = vpop.permute.xlu0 %1026
    %v1030 = vunpack.c.l.s4 839922192
    %v1031 = vunpack.c.0.s8 %v1030
    %v1032 = vperm.slane %v1027, %v1031
    %1034 = vset.pattern.permute.xlu0 0
    %1035 = vperm.xlu0 %1034, %v793
    %v1036 = vpop.permute.xlu0 %1035
    %v1039 = vunpack.c.l.s4 839922192
    %v1040 = vunpack.c.0.s8 %v1039
    %v1041 = vperm.slane %v1036, %v1040
    %1043 = vset.pattern.permute.xlu0 0
    %1044 = vperm.xlu0 %1043, %v794
    %v1045 = vpop.permute.xlu0 %1044
    %v1048 = vunpack.c.l.s4 839922192
    %v1049 = vunpack.c.0.s8 %v1048
    %v1050 = vperm.slane %v1045, %v1049
    %1052 = vset.pattern.permute.xlu0 0
    %1053 = vperm.xlu0 %1052, %v795
    %v1054 = vpop.permute.xlu0 %1053
    %v1057 = vunpack.c.l.s4 839922192
    %v1058 = vunpack.c.0.s8 %v1057
    %v1059 = vperm.slane %v1054, %v1058
    %1061 = vset.pattern.permute.xlu0 0
    %1062 = vperm.xlu0 %1061, %v796
    %v1063 = vpop.permute.xlu0 %1062
    %v1066 = vunpack.c.l.s4 839922192
    %v1067 = vunpack.c.0.s8 %v1066
    %v1068 = vperm.slane %v1063, %v1067
    %1070 = vset.pattern.permute.xlu0 0
    %1071 = vperm.xlu0 %1070, %v797
    %v1072 = vpop.permute.xlu0 %1071
    %v1075 = vunpack.c.l.s4 839922192
    %v1076 = vunpack.c.0.s8 %v1075
    %v1077 = vperm.slane %v1072, %v1076
    %1079 = vset.pattern.permute.xlu0 0
    %1080 = vperm.xlu0 %1079, %v798
    %v1081 = vpop.permute.xlu0 %1080
    %v1084 = vunpack.c.l.s4 839922192
    %v1085 = vunpack.c.0.s8 %v1084
    %v1086 = vperm.slane %v1081, %v1085
    %v1087 = vunpack.c.l.bf16 %v735
    %v1088 = vunpack.c.l.bf16 %v736
    %v1089 = vunpack.c.l.bf16 %v737
    %v1090 = vunpack.c.l.bf16 %v738
    %v1091 = vunpack.c.l.bf16 %v739
    %v1092 = vunpack.c.l.bf16 %v740
    %v1093 = vunpack.c.l.bf16 %v741
    %v1094 = vunpack.c.l.bf16 %v742
    %v1095 = vunpack.c.l.bf16 %v743
    %v1096 = vunpack.c.l.bf16 %v744
    %v1097 = vunpack.c.l.bf16 %v745
    %v1098 = vunpack.c.l.bf16 %v746
    %v1099 = vunpack.c.l.bf16 %v747
    %v1100 = vunpack.c.l.bf16 %v748
    %v1101 = vunpack.c.l.bf16 %v749
    %v1102 = vunpack.c.l.bf16 %v750
    %v1103 = vunpack.c.l.bf16 %v751
    %v1104 = vunpack.c.l.bf16 %v752
    %v1105 = vunpack.c.l.bf16 %v753
    %v1106 = vunpack.c.l.bf16 %v754
    %v1107 = vunpack.c.l.bf16 %v755
    %v1108 = vunpack.c.l.bf16 %v756
    %v1109 = vunpack.c.l.bf16 %v757
    %v1110 = vunpack.c.l.bf16 %v758
    %v1111 = vunpack.c.l.bf16 %v759
    %v1112 = vunpack.c.l.bf16 %v760
    %v1113 = vunpack.c.l.bf16 %v761
    %v1114 = vunpack.c.l.bf16 %v762
    %v1115 = vunpack.c.l.bf16 %v763
    %v1116 = vunpack.c.l.bf16 %v764
    %v1117 = vunpack.c.l.bf16 %v765
    %v1118 = vunpack.c.l.bf16 %v766
    %v1119 = vunpack.c.l.bf16 %v807
    %v1120 = vunpack.c.l.bf16 %v816
    %v1121 = vunpack.c.l.bf16 %v825
    %v1122 = vunpack.c.l.bf16 %v834
    %v1123 = vunpack.c.l.bf16 %v843
    %v1124 = vunpack.c.l.bf16 %v852
    %v1125 = vunpack.c.l.bf16 %v861
    %v1126 = vunpack.c.l.bf16 %v870
    %v1127 = vunpack.c.l.bf16 %v879
    %v1128 = vunpack.c.l.bf16 %v888
    %v1129 = vunpack.c.l.bf16 %v897
    %v1130 = vunpack.c.l.bf16 %v906
    %v1131 = vunpack.c.l.bf16 %v915
    %v1132 = vunpack.c.l.bf16 %v924
    %v1133 = vunpack.c.l.bf16 %v933
    %v1134 = vunpack.c.l.bf16 %v942
    %v1135 = vunpack.c.l.bf16 %v951
    %v1136 = vunpack.c.l.bf16 %v960
    %v1137 = vunpack.c.l.bf16 %v969
    %v1138 = vunpack.c.l.bf16 %v978
    %v1139 = vunpack.c.l.bf16 %v987
    %v1140 = vunpack.c.l.bf16 %v996
    %v1141 = vunpack.c.l.bf16 %v1005
    %v1142 = vunpack.c.l.bf16 %v1014
    %v1143 = vunpack.c.l.bf16 %v1023
    %v1144 = vunpack.c.l.bf16 %v1032
    %v1145 = vunpack.c.l.bf16 %v1041
    %v1146 = vunpack.c.l.bf16 %v1050
    %v1147 = vunpack.c.l.bf16 %v1059
    %v1148 = vunpack.c.l.bf16 %v1068
    %v1149 = vunpack.c.l.bf16 %v1077
    %v1150 = vunpack.c.l.bf16 %v1086
    %v1151 = vadd.f32 %v1087, %v1119
    %v1152 = vadd.f32 %v1088, %v1120
    %v1153 = vadd.f32 %v1089, %v1121
    %v1154 = vadd.f32 %v1090, %v1122
    %v1155 = vadd.f32 %v1091, %v1123
    %v1156 = vadd.f32 %v1092, %v1124
    %v1157 = vadd.f32 %v1093, %v1125
    %v1158 = vadd.f32 %v1094, %v1126
    %v1159 = vadd.f32 %v1095, %v1127
    %v1160 = vadd.f32 %v1096, %v1128
    %v1161 = vadd.f32 %v1097, %v1129
    %v1162 = vadd.f32 %v1098, %v1130
    %v1163 = vadd.f32 %v1099, %v1131
    %v1164 = vadd.f32 %v1100, %v1132
    %v1165 = vadd.f32 %v1101, %v1133
    %v1166 = vadd.f32 %v1102, %v1134
    %v1167 = vadd.f32 %v1103, %v1135
    %v1168 = vadd.f32 %v1104, %v1136
    %v1169 = vadd.f32 %v1105, %v1137
    %v1170 = vadd.f32 %v1106, %v1138
    %v1171 = vadd.f32 %v1107, %v1139
    %v1172 = vadd.f32 %v1108, %v1140
    %v1173 = vadd.f32 %v1109, %v1141
    %v1174 = vadd.f32 %v1110, %v1142
    %v1175 = vadd.f32 %v1111, %v1143
    %v1176 = vadd.f32 %v1112, %v1144
    %v1177 = vadd.f32 %v1113, %v1145
    %v1178 = vadd.f32 %v1114, %v1146
    %v1179 = vadd.f32 %v1115, %v1147
    %v1180 = vadd.f32 %v1116, %v1148
    %v1181 = vadd.f32 %v1117, %v1149
    %v1182 = vadd.f32 %v1118, %v1150
    %v1183 = vpack.c.bf16 %v1151, %v1151
    %v1184 = vpack.c.bf16 %v1152, %v1152
    %v1185 = vpack.c.bf16 %v1153, %v1153
    %v1186 = vpack.c.bf16 %v1154, %v1154
    %v1187 = vpack.c.bf16 %v1155, %v1155
    %v1188 = vpack.c.bf16 %v1156, %v1156
    %v1189 = vpack.c.bf16 %v1157, %v1157
    %v1190 = vpack.c.bf16 %v1158, %v1158
    %v1191 = vpack.c.bf16 %v1159, %v1159
    %v1192 = vpack.c.bf16 %v1160, %v1160
    %v1193 = vpack.c.bf16 %v1161, %v1161
    %v1194 = vpack.c.bf16 %v1162, %v1162
    %v1195 = vpack.c.bf16 %v1163, %v1163
    %v1196 = vpack.c.bf16 %v1164, %v1164
    %v1197 = vpack.c.bf16 %v1165, %v1165
    %v1198 = vpack.c.bf16 %v1166, %v1166
    %v1199 = vpack.c.bf16 %v1167, %v1167
    %v1200 = vpack.c.bf16 %v1168, %v1168
    %v1201 = vpack.c.bf16 %v1169, %v1169
    %v1202 = vpack.c.bf16 %v1170, %v1170
    %v1203 = vpack.c.bf16 %v1171, %v1171
    %v1204 = vpack.c.bf16 %v1172, %v1172
    %v1205 = vpack.c.bf16 %v1173, %v1173
    %v1206 = vpack.c.bf16 %v1174, %v1174
    %v1207 = vpack.c.bf16 %v1175, %v1175
    %v1208 = vpack.c.bf16 %v1176, %v1176
    %v1209 = vpack.c.bf16 %v1177, %v1177
    %v1210 = vpack.c.bf16 %v1178, %v1178
    %v1211 = vpack.c.bf16 %v1179, %v1179
    %v1212 = vpack.c.bf16 %v1180, %v1180
    %v1213 = vpack.c.bf16 %v1181, %v1181
    %v1214 = vpack.c.bf16 %v1182, %v1182
    %v1215 = vunpack.c.l.bf16 %v1183
    %v1216 = vunpack.c.l.bf16 %v1184
    %v1217 = vunpack.c.l.bf16 %v1185
    %v1218 = vunpack.c.l.bf16 %v1186
    %v1219 = vunpack.c.l.bf16 %v1187
    %v1220 = vunpack.c.l.bf16 %v1188
    %v1221 = vunpack.c.l.bf16 %v1189
    %v1222 = vunpack.c.l.bf16 %v1190
    %v1223 = vunpack.c.l.bf16 %v1191
    %v1224 = vunpack.c.l.bf16 %v1192
    %v1225 = vunpack.c.l.bf16 %v1193
    %v1226 = vunpack.c.l.bf16 %v1194
    %v1227 = vunpack.c.l.bf16 %v1195
    %v1228 = vunpack.c.l.bf16 %v1196
    %v1229 = vunpack.c.l.bf16 %v1197
    %v1230 = vunpack.c.l.bf16 %v1198
    %v1231 = vunpack.c.l.bf16 %v1199
    %v1232 = vunpack.c.l.bf16 %v1200
    %v1233 = vunpack.c.l.bf16 %v1201
    %v1234 = vunpack.c.l.bf16 %v1202
    %v1235 = vunpack.c.l.bf16 %v1203
    %v1236 = vunpack.c.l.bf16 %v1204
    %v1237 = vunpack.c.l.bf16 %v1205
    %v1238 = vunpack.c.l.bf16 %v1206
    %v1239 = vunpack.c.l.bf16 %v1207
    %v1240 = vunpack.c.l.bf16 %v1208
    %v1241 = vunpack.c.l.bf16 %v1209
    %v1242 = vunpack.c.l.bf16 %v1210
    %v1243 = vunpack.c.l.bf16 %v1211
    %v1244 = vunpack.c.l.bf16 %v1212
    %v1245 = vunpack.c.l.bf16 %v1213
    %v1246 = vunpack.c.l.bf16 %v1214
    %v1247 = vmul.f32 %v1215, 0.20019531
    %v1248 = vmul.f32 %v1216, 0.20019531
    %v1249 = vmul.f32 %v1217, 0.20019531
    %v1250 = vmul.f32 %v1218, 0.20019531
    %v1251 = vmul.f32 %v1219, 0.20019531
    %v1252 = vmul.f32 %v1220, 0.20019531
    %v1253 = vmul.f32 %v1221, 0.20019531
    %v1254 = vmul.f32 %v1222, 0.20019531
    %v1255 = vmul.f32 %v1223, 0.20019531
    %v1256 = vmul.f32 %v1224, 0.20019531
    %v1257 = vmul.f32 %v1225, 0.20019531
    %v1258 = vmul.f32 %v1226, 0.20019531
    %v1259 = vmul.f32 %v1227, 0.20019531
    %v1260 = vmul.f32 %v1228, 0.20019531
    %v1261 = vmul.f32 %v1229, 0.20019531
    %v1262 = vmul.f32 %v1230, 0.20019531
    %v1263 = vmul.f32 %v1231, 0.20019531
    %v1264 = vmul.f32 %v1232, 0.20019531
    %v1265 = vmul.f32 %v1233, 0.20019531
    %v1266 = vmul.f32 %v1234, 0.20019531
    %v1267 = vmul.f32 %v1235, 0.20019531
    %v1268 = vmul.f32 %v1236, 0.20019531
    %v1269 = vmul.f32 %v1237, 0.20019531
    %v1270 = vmul.f32 %v1238, 0.20019531
    %v1271 = vmul.f32 %v1239, 0.20019531
    %v1272 = vmul.f32 %v1240, 0.20019531
    %v1273 = vmul.f32 %v1241, 0.20019531
    %v1274 = vmul.f32 %v1242, 0.20019531
    %v1275 = vmul.f32 %v1243, 0.20019531
    %v1276 = vmul.f32 %v1244, 0.20019531
    %v1277 = vmul.f32 %v1245, 0.20019531
    %v1278 = vmul.f32 %v1246, 0.20019531
    %v1279 = vpack.c.bf16 %v1247, %v1247
    %v1280 = vpack.c.bf16 %v1248, %v1248
    %v1281 = vpack.c.bf16 %v1249, %v1249
    %v1282 = vpack.c.bf16 %v1250, %v1250
    %v1283 = vpack.c.bf16 %v1251, %v1251
    %v1284 = vpack.c.bf16 %v1252, %v1252
    %v1285 = vpack.c.bf16 %v1253, %v1253
    %v1286 = vpack.c.bf16 %v1254, %v1254
    %v1287 = vpack.c.bf16 %v1255, %v1255
    %v1288 = vpack.c.bf16 %v1256, %v1256
    %v1289 = vpack.c.bf16 %v1257, %v1257
    %v1290 = vpack.c.bf16 %v1258, %v1258
    %v1291 = vpack.c.bf16 %v1259, %v1259
    %v1292 = vpack.c.bf16 %v1260, %v1260
    %v1293 = vpack.c.bf16 %v1261, %v1261
    %v1294 = vpack.c.bf16 %v1262, %v1262
    %v1295 = vpack.c.bf16 %v1263, %v1263
    %v1296 = vpack.c.bf16 %v1264, %v1264
    %v1297 = vpack.c.bf16 %v1265, %v1265
    %v1298 = vpack.c.bf16 %v1266, %v1266
    %v1299 = vpack.c.bf16 %v1267, %v1267
    %v1300 = vpack.c.bf16 %v1268, %v1268
    %v1301 = vpack.c.bf16 %v1269, %v1269
    %v1302 = vpack.c.bf16 %v1270, %v1270
    %v1303 = vpack.c.bf16 %v1271, %v1271
    %v1304 = vpack.c.bf16 %v1272, %v1272
    %v1305 = vpack.c.bf16 %v1273, %v1273
    %v1306 = vpack.c.bf16 %v1274, %v1274
    %v1307 = vpack.c.bf16 %v1275, %v1275
    %v1308 = vpack.c.bf16 %v1276, %v1276
    %v1309 = vpack.c.bf16 %v1277, %v1277
    %v1310 = vpack.c.bf16 %v1278, %v1278
    %v1311 = vunpack.c.l.bf16 %v1279
    %v1312 = vunpack.c.l.bf16 %v1280
    %v1313 = vunpack.c.l.bf16 %v1281
    %v1314 = vunpack.c.l.bf16 %v1282
    %v1315 = vunpack.c.l.bf16 %v1283
    %v1316 = vunpack.c.l.bf16 %v1284
    %v1317 = vunpack.c.l.bf16 %v1285
    %v1318 = vunpack.c.l.bf16 %v1286
    %v1319 = vunpack.c.l.bf16 %v1287
    %v1320 = vunpack.c.l.bf16 %v1288
    %v1321 = vunpack.c.l.bf16 %v1289
    %v1322 = vunpack.c.l.bf16 %v1290
    %v1323 = vunpack.c.l.bf16 %v1291
    %v1324 = vunpack.c.l.bf16 %v1292
    %v1325 = vunpack.c.l.bf16 %v1293
    %v1326 = vunpack.c.l.bf16 %v1294
    %v1327 = vunpack.c.l.bf16 %v1295
    %v1328 = vunpack.c.l.bf16 %v1296
    %v1329 = vunpack.c.l.bf16 %v1297
    %v1330 = vunpack.c.l.bf16 %v1298
    %v1331 = vunpack.c.l.bf16 %v1299
    %v1332 = vunpack.c.l.bf16 %v1300
    %v1333 = vunpack.c.l.bf16 %v1301
    %v1334 = vunpack.c.l.bf16 %v1302
    %v1335 = vunpack.c.l.bf16 %v1303
    %v1336 = vunpack.c.l.bf16 %v1304
    %v1337 = vunpack.c.l.bf16 %v1305
    %v1338 = vunpack.c.l.bf16 %v1306
    %v1339 = vunpack.c.l.bf16 %v1307
    %v1340 = vunpack.c.l.bf16 %v1308
    %v1341 = vunpack.c.l.bf16 %v1309
    %v1342 = vunpack.c.l.bf16 %v1310
    %v1343 = vmax.f32 %v1215, %v1311
    %v1344 = vmax.f32 %v1216, %v1312
    %v1345 = vmax.f32 %v1217, %v1313
    %v1346 = vmax.f32 %v1218, %v1314
    %v1347 = vmax.f32 %v1219, %v1315
    %v1348 = vmax.f32 %v1220, %v1316
    %v1349 = vmax.f32 %v1221, %v1317
    %v1350 = vmax.f32 %v1222, %v1318
    %v1351 = vmax.f32 %v1223, %v1319
    %v1352 = vmax.f32 %v1224, %v1320
    %v1353 = vmax.f32 %v1225, %v1321
    %v1354 = vmax.f32 %v1226, %v1322
    %v1355 = vmax.f32 %v1227, %v1323
    %v1356 = vmax.f32 %v1228, %v1324
    %v1357 = vmax.f32 %v1229, %v1325
    %v1358 = vmax.f32 %v1230, %v1326
    %v1359 = vmax.f32 %v1231, %v1327
    %v1360 = vmax.f32 %v1232, %v1328
    %v1361 = vmax.f32 %v1233, %v1329
    %v1362 = vmax.f32 %v1234, %v1330
    %v1363 = vmax.f32 %v1235, %v1331
    %v1364 = vmax.f32 %v1236, %v1332
    %v1365 = vmax.f32 %v1237, %v1333
    %v1366 = vmax.f32 %v1238, %v1334
    %v1367 = vmax.f32 %v1239, %v1335
    %v1368 = vmax.f32 %v1240, %v1336
    %v1369 = vmax.f32 %v1241, %v1337
    %v1370 = vmax.f32 %v1242, %v1338
    %v1371 = vmax.f32 %v1243, %v1339
    %v1372 = vmax.f32 %v1244, %v1340
    %v1373 = vmax.f32 %v1245, %v1341
    %v1374 = vmax.f32 %v1246, %v1342
    %v1375 = vpack.c.bf16 %v1344, %v1343
    %v1376 = vpack.c.bf16 %v1346, %v1345
    %v1377 = vpack.c.bf16 %v1348, %v1347
    %v1378 = vpack.c.bf16 %v1350, %v1349
    %v1379 = vpack.c.bf16 %v1352, %v1351
    %v1380 = vpack.c.bf16 %v1354, %v1353
    %v1381 = vpack.c.bf16 %v1356, %v1355
    %v1382 = vpack.c.bf16 %v1358, %v1357
    %v1383 = vpack.c.bf16 %v1360, %v1359
    %v1384 = vpack.c.bf16 %v1362, %v1361
    %v1385 = vpack.c.bf16 %v1364, %v1363
    %v1386 = vpack.c.bf16 %v1366, %v1365
    %v1387 = vpack.c.bf16 %v1368, %v1367
    %v1388 = vpack.c.bf16 %v1370, %v1369
    %v1389 = vpack.c.bf16 %v1372, %v1371
    %v1390 = vpack.c.bf16 %v1374, %v1373
    %v1391 = vld [vmem:[%s5] sm:$0x3]
    %s1392 = sld [smem:[#allocation2]]
    %v1393 = vstv %s1392
    %1395 = vst [vmem:[#allocation1] ss:$9 sm:$0xff] %v1391
    %v1396 = vld [vmem:[#allocation1] sm:$0xff]
    %v1397 = vld [vmem:[#allocation1 + $0x9] sm:$0xff]
    %1400 = vmatpush.bf16.msra.mxu0 %v1382
    %1401 = vmatpush.bf16.msra.mxu0 %v1381
    %1402 = vmatpush.bf16.msra.mxu0 %v1380
    %1403 = vmatpush.bf16.msra.mxu0 %v1379
    %1404 = vmatpush.bf16.msra.mxu0 %v1378
    %1405 = vmatpush.bf16.msra.mxu0 %v1377
    %1406 = vmatpush.bf16.msra.mxu0 %v1376
    %1407 = vmatpush.bf16.msra.mxu0 %v1375
    %1408 = vmatmul.bf16.gmra.mxu0 %v1396
    %v1409 = vpop.f32.mrf.mxu0
    %v1410 = vadd.f32 %v1393, %v1409
    %v1411 = vpop.f32.mrf.mxu0
    %1412 = vdwg.mxu0
    %1413 = vmatpush.bf16.msra.mxu0 %v1390
    %1414 = vmatpush.bf16.msra.mxu0 %v1389
    %1415 = vmatpush.bf16.msra.mxu0 %v1388
    %1416 = vmatpush.bf16.msra.mxu0 %v1387
    %1417 = vmatpush.bf16.msra.mxu0 %v1386
    %1418 = vmatpush.bf16.msra.mxu0 %v1385
    %1419 = vmatpush.bf16.msra.mxu0 %v1384
    %1420 = vmatpush.bf16.msra.mxu0 %v1383
    %1421 = vmatmul.bf16.gmra.mxu0 %v1397
    %v1422 = vpop.f32.mrf.mxu0
    %v1423 = vadd.f32 %v1410, %v1422
    %v1424 = vpop.f32.mrf.mxu0
    %1425 = vdwg.mxu0
    %v1426 = vsub.f32 0.0, %v1423
    %v1427 = vmul.f32 %v1426, 1.442695
    %v1428 = vpow.pop %v1427
    %v1429 = vadd.f32 %v1428, 1.0
    %v1430 = vrcp.pop %v1429
    %1431 = vst [vmem:[%s7] sm:$0x1] %v1430
    // Predicated region
    $region34: #{discriminator_forward.1} parent=1 // pred_check
      _
    $region35: #{discriminator_forward.1} parent=1 // pred_check_branch
      %1433 = sbr.rel (0) target = $region37
    $region36: #{discriminator_forward.1} parent=1 // pred_region
      _
    $region37: #{discriminator_forward.1} parent=1 // pred_fallthru
      _
    // Predicated region
    $region38: #{discriminator_forward.1} parent=1 // pred_check
      _
    $region39: #{discriminator_forward.1} parent=1 // pred_check_branch
      %1435 = sbr.rel (0) target = $region41
    $region40: #{discriminator_forward.1} parent=1 // pred_region
      _
    $region41: #{discriminator_forward.1} parent=1 // pred_fallthru
      _
    %1436 = vsyncpa [#allocation4], 1

</llo_original>
